<compile_context>
chip_gen: v7x
topology: tpu7x:2x2x1
jax: 0.10.0
libtpu: 0.0.40
codegen_flags: <defaults>
</compile_context>

<pallas_src>
import jax
import jax.numpy as jnp
from jax.experimental import pallas as pl
from jax.experimental.pallas import tpu as pltpu


def _round_up(x, m):
    return (x + m - 1) // m * m


def emb_to_pred_kernel(x_ref, w_ref, b_ref, logits_ref, pred_ref, acc_ref):
    k = pl.program_id(2)

    @pl.when(k == 0)
    def _init():
        acc_ref[...] = jnp.zeros_like(acc_ref)

    # Hot path: pure MXU matmul-accumulate in f32.
    acc_ref[...] += jnp.dot(
        x_ref[...], w_ref[...], preferred_element_type=jnp.float32
    )

    @pl.when(k == pl.num_programs(2) - 1)
    def _finalize():
        # Bias added once, on the f32 accumulator (not per-k).
        logits = acc_ref[...] + b_ref[...]          # (1, tn) broadcasts over rows
        logits_ref[...] = logits.astype(logits_ref.dtype)
        # sigmoid(x) = 1 / (1 + exp(-x)); exp and approx-recip both go to the EUP.
        pred = pl.reciprocal(1.0 + jnp.exp(-logits), approx=True)
        pred_ref[...] = pred.astype(pred_ref.dtype)


def emb_to_pred_wrapper(features, weight, bias, *, tm=256, tn=512, tk=512):
    """features: [B, H] f32, weight: [H, T] f32, bias: [T] f32 ->
    (logits [B, T] f32, prediction [B, T] f32)."""
    B, H = features.shape
    H2, T = weight.shape
    assert H == H2

    # Adaptive, hardware-aligned tiles (sublane = 8, lane = 128); clamp to the
    # problem size for small shapes while keeping output tiles lane-dense.
    tm = min(tm, _round_up(B, 8))
    tn = min(tn, _round_up(T, 128))
    tk = min(tk, _round_up(H, 128))

    Bp, Hp, Tp = _round_up(B, tm), _round_up(H, tk), _round_up(T, tn)

    # bf16 inputs (zero-padded to tile multiples); f32 accumulation in-kernel.
    x = jnp.zeros((Bp, Hp), jnp.bfloat16).at[:B, :H].set(
        features.astype(jnp.bfloat16))
    w = jnp.zeros((Hp, Tp), jnp.bfloat16).at[:H, :T].set(
        weight.astype(jnp.bfloat16))
    b2 = jnp.zeros((1, Tp), jnp.float32).at[:, :T].set(
        bias.astype(jnp.float32))

    grid = (Bp // tm, Tp // tn, Hp // tk)

    # Conservative VMEM budget: double-buffered bf16 input tiles + bias,
    # double-buffered f32 output tiles, f32 accumulator; 2x headroom but
    # clamped so the same tiling also fits v7x's 64 MiB VMEM.
    vmem_bytes = (
        2 * (tm * tk + tk * tn) * 2   # x/w tiles, bf16, double-buffered
        + 2 * tn * 4                  # bias tile, f32, double-buffered
        + 2 * 2 * tm * tn * 4         # logits + pred tiles, f32, double-buffered
        + tm * tn * 4                 # f32 accumulator scratch
    )
    vmem_limit = int(min(max(2 * vmem_bytes, 16 << 20), 48 << 20))

    logits_p, pred_p = pl.pallas_call(
        emb_to_pred_kernel,
        out_shape=(
            jax.ShapeDtypeStruct((Bp, Tp), jnp.float32),
            jax.ShapeDtypeStruct((Bp, Tp), jnp.float32),
        ),
        grid_spec=pltpu.PrefetchScalarGridSpec(
            num_scalar_prefetch=0,
            grid=grid,
            in_specs=[
                pl.BlockSpec((tm, tk), lambda i, j, k: (i, k)),
                pl.BlockSpec((tk, tn), lambda i, j, k: (k, j)),
                pl.BlockSpec((1, tn), lambda i, j, k: (0, j)),
            ],
            out_specs=[
                pl.BlockSpec((tm, tn), lambda i, j, k: (i, j)),
                pl.BlockSpec((tm, tn), lambda i, j, k: (i, j)),
            ],
            scratch_shapes=[pltpu.VMEM((tm, tn), jnp.float32)],
        ),
        compiler_params=pltpu.CompilerParams(
            dimension_semantics=("parallel", "parallel", "arbitrary"),
            vmem_limit_bytes=vmem_limit,
        ),
    )(x, w, b2)

    # Strip padding back to the caller's logical shapes.
    return logits_p[:B, :T], pred_p[:B, :T]


if __name__ == "__main__":
    # Small, deterministic shapes consistent with an embedding->tags head.
    B, H, T = 8, 32, 16
    key = jax.random.PRNGKey(0)
    kx, kw, kb = jax.random.split(key, 3)

    features = jax.random.normal(kx, (B, H), dtype=jnp.float32)
    # Deterministic synthetic parameters for the inner Linear(H -> T).
    weight = jax.random.normal(kw, (H, T), dtype=jnp.float32) * 0.05
    bias = jax.random.normal(kb, (T,), dtype=jnp.float32) * 0.01

    logits, prediction = emb_to_pred_wrapper(features, weight, bias)
    jax.block_until_ready((logits, prediction))

    # Reference with the same bf16 input rounding, f32 accumulation
    # (matches the kernel's MXU path; same semantics as the PyTorch wrapper).
    ref_logits = (
        features.astype(jnp.bfloat16).astype(jnp.float32)
        @ weight.astype(jnp.bfloat16).astype(jnp.float32)
    ) + bias
    ref_pred = jax.nn.sigmoid(ref_logits)

    assert logits.shape == (B, T) and prediction.shape == (B, T)
    assert jnp.allclose(logits, ref_logits, atol=1e-4, rtol=1e-4)
    # pred uses the EUP approx reciprocal -> slightly looser tolerance.
    assert jnp.allclose(prediction, ref_pred, atol=2e-3, rtol=2e-3)

    print("KERNEL_OK")
</pallas_src>

<mosaic_0001>
module attributes {stable_mosaic.version = 11 : i64} {
  func.func @emb_to_pred_kernel(%arg0: i32, %arg1: i32, %arg2: i32, %arg3: memref<8x128xbf16, #tpu.memory_space<vmem>>, %arg4: memref<128x128xbf16, #tpu.memory_space<vmem>>, %arg5: memref<1x128xf32, #tpu.memory_space<vmem>>, %arg6: memref<8x128xf32, #tpu.memory_space<vmem>>, %arg7: memref<8x128xf32, #tpu.memory_space<vmem>>, %arg8: memref<8x128xf32, #tpu.memory_space<vmem>>) attributes {dimension_semantics = [#tpu.dimension_semantics<parallel>, #tpu.dimension_semantics<parallel>, #tpu.dimension_semantics<arbitrary>], iteration_bounds = array<i64: 1, 1, 1>, scalar_prefetch = 0 : i64, scratch_operands = 1 : i64, tpu.core_type = #tpu.core_type<tc>, window_params = [{transform_indices = @transform_0, window_bounds = array<i64: 8, 128>}, {transform_indices = @transform_1, window_bounds = array<i64: 128, 128>}, {transform_indices = @transform_2, window_bounds = array<i64: 1, 128>}, {transform_indices = @transform_3, window_bounds = array<i64: 8, 128>}, {transform_indices = @transform_4, window_bounds = array<i64: 8, 128>}]} {
    %c0_i32 = arith.constant 0 : i32
    %0 = arith.cmpi eq, %arg2, %c0_i32 : i32
    %1 = arith.extui %0 : i1 to i32
    %c0_i32_0 = arith.constant 0 : i32
    %2 = arith.cmpi ne, %1, %c0_i32_0 : i32
    scf.if %2 {
      %cst_10 = arith.constant 0.000000e+00 : f32
      %12 = vector.broadcast %cst_10 : f32 to vector<8x128xf32>
      %c0_11 = arith.constant 0 : index
      %c0_12 = arith.constant 0 : index
      %13 = vector.load %arg8[%c0_11, %c0_12] : memref<8x128xf32, #tpu.memory_space<vmem>>, vector<8x128xf32>
      tpu.vector_store %arg8[%c0_11, %c0_12], %12 {strides = array<i32>} : memref<8x128xf32, #tpu.memory_space<vmem>>, vector<8x128xf32>,
    } else {
    }
    %c0 = arith.constant 0 : index
    %c0_1 = arith.constant 0 : index
    %3 = vector.load %arg8[%c0, %c0_1] : memref<8x128xf32, #tpu.memory_space<vmem>>, vector<8x128xf32>
    %c0_2 = arith.constant 0 : index
    %c0_3 = arith.constant 0 : index
    %4 = vector.load %arg3[%c0_2, %c0_3] : memref<8x128xbf16, #tpu.memory_space<vmem>>, vector<8x128xbf16>
    %c0_4 = arith.constant 0 : index
    %c0_5 = arith.constant 0 : index
    %5 = vector.load %arg4[%c0_4, %c0_5] : memref<128x128xbf16, #tpu.memory_space<vmem>>, vector<128x128xbf16>
    %cst = arith.constant dense<0.000000e+00> : vector<8x128xf32>
    %6 = tpu.matmul %4, %5, %cst {dimension_numbers = #tpu.dot_dimension_numbers<[1], [0], [0], [1], [0, 0, 1, 1], [], []>} : vector<8x128xbf16>, vector<128x128xbf16>, vector<8x128xf32> -> vector<8x128xf32>
    %7 = arith.addf %3, %6 : vector<8x128xf32>
    %c0_6 = arith.constant 0 : index
    %c0_7 = arith.constant 0 : index
    %8 = vector.load %arg8[%c0_6, %c0_7] : memref<8x128xf32, #tpu.memory_space<vmem>>, vector<8x128xf32>
    tpu.vector_store %arg8[%c0_6, %c0_7], %7 {strides = array<i32>} : memref<8x128xf32, #tpu.memory_space<vmem>>, vector<8x128xf32>,
    %c0_i32_8 = arith.constant 0 : i32
    %9 = arith.cmpi eq, %arg2, %c0_i32_8 : i32
    %10 = arith.extui %9 : i1 to i32
    %c0_i32_9 = arith.constant 0 : i32
    %11 = arith.cmpi ne, %10, %c0_i32_9 : i32
    scf.if %11 {
      %c0_10 = arith.constant 0 : index
      %c0_11 = arith.constant 0 : index
      %12 = vector.load %arg8[%c0_10, %c0_11] : memref<8x128xf32, #tpu.memory_space<vmem>>, vector<8x128xf32>
      %c0_12 = arith.constant 0 : index
      %c0_13 = arith.constant 0 : index
      %13 = vector.load %arg5[%c0_12, %c0_13] : memref<1x128xf32, #tpu.memory_space<vmem>>, vector<1x128xf32>
      %14 = vector.broadcast %13 : vector<1x128xf32> to vector<8x128xf32>
      %15 = arith.addf %12, %14 : vector<8x128xf32>
      %c0_14 = arith.constant 0 : index
      %c0_15 = arith.constant 0 : index
      %16 = vector.load %arg6[%c0_14, %c0_15] : memref<8x128xf32, #tpu.memory_space<vmem>>, vector<8x128xf32>
      tpu.vector_store %arg6[%c0_14, %c0_15], %15 {strides = array<i32>} : memref<8x128xf32, #tpu.memory_space<vmem>>, vector<8x128xf32>,
      %cst_16 = arith.constant 0.000000e+00 : f32
      %17 = vector.broadcast %cst_16 : f32 to vector<8x128xf32>
      %18 = arith.subf %17, %15 : vector<8x128xf32>
      %19 = math.exp %18 : vector<8x128xf32>
      %cst_17 = arith.constant 1.000000e+00 : f32
      %20 = vector.broadcast %cst_17 : f32 to vector<8x128xf32>
      %21 = arith.addf %20, %19 : vector<8x128xf32>
      %22 = tpu.reciprocal %21 {approx = true} : vector<8x128xf32> -> vector<8x128xf32>
      %c0_18 = arith.constant 0 : index
      %c0_19 = arith.constant 0 : index
      %23 = vector.load %arg7[%c0_18, %c0_19] : memref<8x128xf32, #tpu.memory_space<vmem>>, vector<8x128xf32>
      tpu.vector_store %arg7[%c0_18, %c0_19], %22 {strides = array<i32>} : memref<8x128xf32, #tpu.memory_space<vmem>>, vector<8x128xf32>,
    } else {
    }
    return
  }
  func.func @transform_0(%arg0: i32, %arg1: i32, %arg2: i32) -> (i32, i32) {
    %c0_i32 = arith.constant 0 : i32
    return %arg0, %arg2 : i32, i32
  }
  func.func @transform_1(%arg0: i32, %arg1: i32, %arg2: i32) -> (i32, i32) {
    %c0_i32 = arith.constant 0 : i32
    return %arg2, %arg1 : i32, i32
  }
  func.func @transform_2(%arg0: i32, %arg1: i32, %arg2: i32) -> (i32, i32) {
    %c0_i32 = arith.constant 0 : i32
    %c0_i32_0 = arith.constant 0 : i32
    return %c0_i32, %arg1 : i32, i32
  }
  func.func @transform_3(%arg0: i32, %arg1: i32, %arg2: i32) -> (i32, i32) {
    %c0_i32 = arith.constant 0 : i32
    return %arg0, %arg1 : i32, i32
  }
  func.func @transform_4(%arg0: i32, %arg1: i32, %arg2: i32) -> (i32, i32) {
    %c0_i32 = arith.constant 0 : i32
    return %arg0, %arg1 : i32, i32
  }
}

</mosaic_0001>

<llo_original>
// kernel: tpu_custom_call.1
$region0: #{tpu_custom_call.1}
  #allocation0 [shape = 'u32[]', space=smem, size = 0x4, offset = 0x4, fixed_abs, tag = 'smem constant byte address 0x4 - core index']
  #allocation1 [shape = 'u32[144,128]{1,0:T(1,128)}', space=vmem, size = 0x12000, scoped, tag = 'internal scratch']
  #allocation2 [shape = 'f32[8,128]{1,0:T(8,128)}', space=vmem, size = 0x1000, scoped, tag = 'scratch operand']
  %s0 = inlined_call_operand.hbm [shape: bf16[8,128], index: 0, kind: input, shape index: {}]
  %s1 = inlined_call_operand.hbm [shape: bf16[128,128], index: 1, kind: input, shape index: {}]
  %s2 = inlined_call_operand.vmem [shape: f32[1,128], index: 2, kind: input, shape index: {}]
  %s3 = inlined_call_operand.hbm [shape: f32[8,128], index: 3, kind: output, shape index: {0}]
  %s4 = inlined_call_operand.hbm [shape: f32[8,128], index: 4, kind: output, shape index: {1}]
  %5 = xla_tuple %s3, %s4
  %s6 = sld [smem:[#allocation0]]
  $region46: #{tpu_custom_call.1} parent=0
    _
  %s8 = ssub.s32 1, %s6
  %s9 = scalar_select 0, %s8, %s6
  $region1: #{tpu_custom_call.1} parent=0
    #allocation3 [shape = 'u8[2048]{0}', space=vmem, size = 0x800, scoped, tag = 'input window, operand 0, single buffered']
    #allocation4 [shape = 's32[1]{0}', space=sflag, size = 0x4, scoped, tag = 'scoped memory for tpu_custom_call.1']
    #allocation5 [shape = 's32[1]{0}', space=sflag, size = 0x4, scoped, tag = 'scoped memory for tpu_custom_call.1']
    #allocation6 [shape = 'u8[32768]{0}', space=vmem, size = 0x8000, scoped, tag = 'input window, operand 1, single buffered']
    #allocation7 [shape = 's32[1]{0}', space=sflag, size = 0x4, scoped, tag = 'scoped memory for tpu_custom_call.1']
    #allocation8 [shape = 'u8[4096]{0}', space=vmem, size = 0x1000, scoped, tag = 'output window, operand 0, single buffered']
    #allocation9 [shape = 'u8[4096]{0}', space=vmem, size = 0x1000, scoped, tag = 'output window, operand 1, single buffered']
    #allocation10 [shape = 's32[1]{0}', space=sflag, size = 0x4, scoped, tag = 'scoped memory for tpu_custom_call.1']
    %10 = vsyncpa [#allocation4], 0
    %11 = vsyncpa [#allocation7], 0
    %12 = vsyncpa [#allocation5], 0
    %13 = vsyncpa [#allocation10], 0
    // Predicated region
    $region2: #{tpu_custom_call.1} parent=1 // pred_check
      _
    $region3: #{tpu_custom_call.1} parent=1 // pred_check_branch
      %15 = sbr.rel (0) target = $region5
    $region4: #{tpu_custom_call.1} parent=1 // pred_region
      %s17 = ssub.s32 64, 64
      %18 = vsyncadd [#allocation4], %s17
      %s20 = sshll.u32 [#allocation3], 4
      %s21 = int_to_ptr.vmem [resolvable:$true] %s20
      %23 = dma.hbm_to_vmem [thread:$0]  %s0, 64, %s21, [#allocation4]
    $region5: #{tpu_custom_call.1} parent=1 // pred_fallthru
      _
    // Predicated region
    $region6: #{tpu_custom_call.1} parent=1 // pred_check
      _
    $region7: #{tpu_custom_call.1} parent=1 // pred_check_branch
      %25 = sbr.rel (0) target = $region9
    $region8: #{tpu_custom_call.1} parent=1 // pred_region
      %s27 = ssub.s32 1024, 1024
      %28 = vsyncadd [#allocation7], %s27
      %s29 = sshll.u32 [#allocation6], 4
      %s30 = int_to_ptr.vmem [resolvable:$true] %s29
      %35 = dma.hbm_to_vmem [thread:$0]  %s1, 1024, %s30, [#allocation7], 64, 64, 4
    $region9: #{tpu_custom_call.1} parent=1 // pred_fallthru
      _
    // Predicated region
    $region10: #{tpu_custom_call.1} parent=1 // pred_check
      _
    $region11: #{tpu_custom_call.1} parent=1 // pred_check_branch
      %37 = sbr.rel (0) target = $region13
    $region12: #{tpu_custom_call.1} parent=1 // pred_region
      _
    $region13: #{tpu_custom_call.1} parent=1 // pred_fallthru
      _
    // Predicated region
    $region14: #{tpu_custom_call.1} parent=1 // pred_check
      _
    $region15: #{tpu_custom_call.1} parent=1 // pred_check_branch
      %39 = sbr.rel (0) target = $region17
    $region16: #{tpu_custom_call.1} parent=1 // pred_region
      %40 = dma.done [#allocation4], 64
    $region17: #{tpu_custom_call.1} parent=1 // pred_fallthru
      _
    // Predicated region
    $region18: #{tpu_custom_call.1} parent=1 // pred_check
      _
    $region19: #{tpu_custom_call.1} parent=1 // pred_check_branch
      %42 = sbr.rel (0) target = $region21
    $region20: #{tpu_custom_call.1} parent=1 // pred_region
      %43 = dma.done [#allocation7], 1024
    $region21: #{tpu_custom_call.1} parent=1 // pred_fallthru
      _
    %p45 = scmp.eq.s32.totalorder 0, 0
    // Predicated region
    $region22: #{tpu_custom_call.1} parent=1 // pred_check
      %p46 = pneg %p45
    $region23: #{tpu_custom_call.1} parent=1 // pred_check_branch
      %48 = sbr.rel (%p46) target = $region25
    $region24: #{tpu_custom_call.1} parent=1 // pred_region
      %49 = vst [vmem:[#allocation2] sm:$0xff] 0.0
    $region25: #{tpu_custom_call.1} parent=1 // pred_fallthru
      _
    %v50 = vld [vmem:[#allocation2] sm:$0xff]
    %v51 = vld [vmem:[#allocation3] sm:$0xf]
    %v52 = vld [vmem:[#allocation6] sm:$0xf]
    %v53 = vld [vmem:[#allocation6 + $0x4] sm:$0xf]
    %v54 = vld [vmem:[#allocation6 + $0x8] sm:$0xf]
    %v55 = vld [vmem:[#allocation6 + $0xc] sm:$0xf]
    %v56 = vld [vmem:[#allocation6 + $0x10] sm:$0xf]
    %v57 = vld [vmem:[#allocation6 + $0x14] sm:$0xf]
    %v58 = vld [vmem:[#allocation6 + $0x18] sm:$0xf]
    %v59 = vld [vmem:[#allocation6 + $0x1c] sm:$0xf]
    %v60 = vld [vmem:[#allocation6 + $0x20] sm:$0xf]
    %v61 = vld [vmem:[#allocation6 + $0x24] sm:$0xf]
    %v62 = vld [vmem:[#allocation6 + $0x28] sm:$0xf]
    %v63 = vld [vmem:[#allocation6 + $0x2c] sm:$0xf]
    %v64 = vld [vmem:[#allocation6 + $0x30] sm:$0xf]
    %v65 = vld [vmem:[#allocation6 + $0x34] sm:$0xf]
    %v66 = vld [vmem:[#allocation6 + $0x38] sm:$0xf]
    %v67 = vld [vmem:[#allocation6 + $0x3c] sm:$0xf]
    %v84 = vunpack.c.l.b16 %v52
    %v85 = vunpack.c.l.b16 %v53
    %v86 = vunpack.c.l.b16 %v54
    %v87 = vunpack.c.l.b16 %v55
    %v88 = vunpack.c.l.b16 %v56
    %v89 = vunpack.c.l.b16 %v57
    %v90 = vunpack.c.l.b16 %v58
    %v91 = vunpack.c.l.b16 %v59
    %v92 = vunpack.c.l.b16 %v60
    %v93 = vunpack.c.l.b16 %v61
    %v94 = vunpack.c.l.b16 %v62
    %v95 = vunpack.c.l.b16 %v63
    %v96 = vunpack.c.l.b16 %v64
    %v97 = vunpack.c.l.b16 %v65
    %v98 = vunpack.c.l.b16 %v66
    %v99 = vunpack.c.l.b16 %v67
    %v100 = vpack.c.b16 %v85, %v84
    %v101 = vpack.c.b16 %v87, %v86
    %v102 = vpack.c.b16 %v89, %v88
    %v103 = vpack.c.b16 %v91, %v90
    %v104 = vpack.c.b16 %v93, %v92
    %v105 = vpack.c.b16 %v95, %v94
    %v106 = vpack.c.b16 %v97, %v96
    %v107 = vpack.c.b16 %v99, %v98
    %116 = vmatprep.subr.bf16.mxu0 0
    %117 = vmatpush1.bf16.msra.mxu0 %v100
    %118 = vmatprep.subr.bf16.mxu0 0
    %119 = vmatpush1.bf16.msra.mxu0 %v101
    %120 = vmatprep.subr.bf16.mxu0 0
    %121 = vmatpush1.bf16.msra.mxu0 %v102
    %122 = vmatprep.subr.bf16.mxu0 0
    %123 = vmatpush1.bf16.msra.mxu0 %v103
    %124 = vmatprep.subr.bf16.mxu0 0
    %125 = vmatpush1.bf16.msra.mxu0 %v104
    %126 = vmatprep.subr.bf16.mxu0 0
    %127 = vmatpush1.bf16.msra.mxu0 %v105
    %128 = vmatprep.subr.bf16.mxu0 0
    %129 = vmatpush1.bf16.msra.mxu0 %v106
    %130 = vmatprep.subr.bf16.mxu0 0
    %131 = vmatpush1.bf16.msra.mxu0 %v107
    %132 = vmatprep.subr.bf16.mxu0 0
    %133 = vmatpush1.bf16.msra.mxu0 0
    %134 = vmatprep.subr.bf16.mxu0 0
    %135 = vmatpush1.bf16.msra.mxu0 0
    %136 = vmatprep.subr.bf16.mxu0 0
    %137 = vmatpush1.bf16.msra.mxu0 0
    %138 = vmatprep.subr.bf16.mxu0 0
    %139 = vmatpush1.bf16.msra.mxu0 0
    %140 = vmatprep.subr.bf16.mxu0 0
    %141 = vmatpush1.bf16.msra.mxu0 0
    %142 = vmatprep.subr.bf16.mxu0 0
    %143 = vmatpush1.bf16.msra.mxu0 0
    %144 = vmatprep.subr.bf16.mxu0 0
    %145 = vmatpush1.bf16.msra.mxu0 0
    %146 = vmatprep.subr.bf16.mxu0 0
    %147 = vmatpush1.bf16.msra.mxu0 0
    %148 = vmatprep.mubr.bf16.mxu0 0
    %149 = vmatmul.mubr.bf16.gmra.mrb[0].mxu0 %v51
    %v150 = vpop.f32.mrb[0].mxu0
    %v151 = vadd.f32 0.0, %v150
    %v152 = vpop.f32.mrb[0].mxu0
    %v153 = vpop.f32.mrb[0].mxu0
    %v154 = vpop.f32.mrb[0].mxu0
    %155 = vdwg.mxu0
    %v156 = vadd.f32 %v50, %v151
    %157 = vst [vmem:[#allocation2] sm:$0xff] %v156
    // Predicated region
    $region26: #{tpu_custom_call.1} parent=1 // pred_check
      %p158 = pneg %p45
    $region27: #{tpu_custom_call.1} parent=1 // pred_check_branch
      %160 = sbr.rel (%p158) target = $region29
    $region28: #{tpu_custom_call.1} parent=1 // pred_region
      %v161 = vld [vmem:[#allocation2] sm:$0xff]
      %v162 = vld [vmem:[%s2] sm:$0x1]
      %v164 = vlaneseq
      %v165 = vshrl.u32 %v164, 7
      %v166 = vsub.s32 0, %v165
      %v167 = vrot.slane %v162, %v166
      %v169 = vadd.f32 %v161, %v167
      %170 = vst [vmem:[#allocation8] sm:$0xff] %v169
      %v171 = vsub.f32 0.0, %v169
      %v172 = vmul.f32 %v171, 1.442695
      %v173 = vpow.pop %v172
      %v174 = vadd.f32 %v173, 1.0
      %v175 = vrcp.pop %v174
      %176 = vst [vmem:[#allocation9] sm:$0xff] %v175
    $region29: #{tpu_custom_call.1} parent=1 // pred_fallthru
      _
    // Predicated region
    $region30: #{tpu_custom_call.1} parent=1 // pred_check
      _
    $region31: #{tpu_custom_call.1} parent=1 // pred_check_branch
      %178 = sbr.rel (0) target = $region33
    $region32: #{tpu_custom_call.1} parent=1 // pred_region
      %s180 = ssub.s32 128, 128
      %181 = vsyncadd [#allocation5], %s180
      %s183 = sshll.u32 [#allocation8], 4
      %s184 = int_to_ptr.vmem [resolvable:$true] %s183
      %186 = dma.vmem_to_hbm [thread:$0]  %s184, 128, %s3, [#allocation5]
    $region33: #{tpu_custom_call.1} parent=1 // pred_fallthru
      _
    // Predicated region
    $region34: #{tpu_custom_call.1} parent=1 // pred_check
      _
    $region35: #{tpu_custom_call.1} parent=1 // pred_check_branch
      %188 = sbr.rel (0) target = $region37
    $region36: #{tpu_custom_call.1} parent=1 // pred_region
      %s190 = ssub.s32 128, 128
      %191 = vsyncadd [#allocation10], %s190
      %s193 = sshll.u32 [#allocation9], 4
      %s194 = int_to_ptr.vmem [resolvable:$true] %s193
      %196 = dma.vmem_to_hbm [thread:$0]  %s194, 128, %s4, [#allocation10]
    $region37: #{tpu_custom_call.1} parent=1 // pred_fallthru
      _
    // Predicated region
    $region38: #{tpu_custom_call.1} parent=1 // pred_check
      _
    $region39: #{tpu_custom_call.1} parent=1 // pred_check_branch
      %198 = sbr.rel (0) target = $region41
    $region40: #{tpu_custom_call.1} parent=1 // pred_region
      %199 = dma.done [#allocation5], 128
    $region41: #{tpu_custom_call.1} parent=1 // pred_fallthru
      _
    // Predicated region
    $region42: #{tpu_custom_call.1} parent=1 // pred_check
      _
    $region43: #{tpu_custom_call.1} parent=1 // pred_check_branch
      %201 = sbr.rel (0) target = $region45
    $region44: #{tpu_custom_call.1} parent=1 // pred_region
      %202 = dma.done [#allocation10], 128
    $region45: #{tpu_custom_call.1} parent=1 // pred_fallthru
      _
    %203 = vsyncpa [#allocation4], 1
    %204 = vsyncpa [#allocation7], 1
    %205 = vsyncpa [#allocation5], 1
    %206 = vsyncpa [#allocation10], 1

</llo_original>
